<compile_context>
chip_gen: v7x
topology: tpu7x:2x2x1
jax: 0.10.0
libtpu: 0.0.40
codegen_flags: <defaults>
</compile_context>

<pallas_src>
import jax
import jax.numpy as jnp
from jax.experimental import pallas as pl
from jax.experimental.pallas import tpu as pltpu


def _make_kernel(C, W, Wc):
    n_chunks = W // Wc

    def kernel(scale_ref, bias_ref, x_ref, sel_ref, out_ref):
        # x_ref:   [h_tile, W*C]   uint8  (interleaved NHWC row chunk, lane-dense)
        # sel_ref: [Wc*C, C*Wc]    bf16   (one-hot de-interleave matrix, VMEM-resident)
        # out_ref: [C, h_tile, W]  f32    (NCHW block, lane-dense last dim)
        sel = sel_ref[...]
        for j in range(n_chunks):  # static, small
            chunk = x_ref[:, j * Wc * C:(j + 1) * Wc * C]
            chunk = chunk.astype(jnp.float32).astype(jnp.bfloat16)  # exact for 0..255
            # Exact channel de-interleave on the MXU: planar[r, c*Wc + w] = chunk[r, w*C + c]
            planar = jnp.dot(chunk, sel, preferred_element_type=jnp.float32)
            for c in range(C):
                out_ref[c, :, j * Wc:(j + 1) * Wc] = (
                    planar[:, c * Wc:(c + 1) * Wc] * scale_ref[c] + bias_ref[c])

    return kernel


def _pick_h_tile(H, bytes_per_out_row, target_bytes=2 << 20):
    """Largest divisor of H (multiple of 8, or H itself) keeping the per-step
    output block under ~target_bytes (caps VMEM footprint, incl. v7x)."""
    target = max(1, target_bytes // bytes_per_out_row)
    if H <= target:
        return H
    for t in range(target, 0, -1):
        if H % t == 0 and t % 8 == 0:
            return t
    return H  # fallback: full extent is always a legal block


def no_loader_forward(image_batch, mask_batch=None,
                      mean=(0.485, 0.456, 0.406), std=(0.229, 0.224, 0.225)):
    """JAX/Pallas equivalent of NoLoaderModule.forward (no augmentations).

    Args:
      image_batch: uint8 [N, H, W, C] (NHWC, as the torch module expects)
      mask_batch:  passed through untouched (may be None)
    Returns:
      (float32 [N, C, H, W], mask_batch)
    """
    N, H, W, C = image_batch.shape
    mean = jnp.asarray(mean, jnp.float32)
    std = jnp.asarray(std, jnp.float32)
    assert mean.shape == (C,) and std.shape == (C,)

    # Fold /255 and the per-channel normalize into a single scale/bias.
    scale = 1.0 / (std * 255.0)
    bias = -mean / std

    # Planar lane chunking: 128-wide output chunks when possible (unmasked stores).
    Wc = 128 if W % 128 == 0 else W
    h_tile = _pick_h_tile(H, C * W * 4)

    # One-hot de-interleave matrix: (chunk @ sel)[r, c*Wc + w] == chunk[r, w*C + c].
    col = jnp.arange(Wc * C)
    planar_col = (col % C) * Wc + (col // C)
    sel = jax.nn.one_hot(planar_col, C * Wc, dtype=jnp.bfloat16)

    # Free reshape (contiguous collapse) -- no HBM copy; kernel reads NHWC directly.
    x2d = image_batch.reshape(N, H, W * C)

    out = pl.pallas_call(
        _make_kernel(C, W, Wc),
        out_shape=jax.ShapeDtypeStruct((N, C, H, W), jnp.float32),
        grid=(N, H // h_tile),
        in_specs=[
            pl.BlockSpec(memory_space=pltpu.SMEM),                        # scale [C]
            pl.BlockSpec(memory_space=pltpu.SMEM),                        # bias  [C]
            pl.BlockSpec((None, h_tile, W * C), lambda n, hi: (n, hi, 0)),
            pl.BlockSpec((Wc * C, C * Wc), lambda n, hi: (0, 0)),         # constant -> resident
        ],
        out_specs=pl.BlockSpec((None, C, h_tile, W), lambda n, hi: (n, 0, hi, 0)),
        compiler_params=pltpu.CompilerParams(
            dimension_semantics=("parallel", "parallel")),
    )(scale, bias, x2d, sel)

    # TODO(synk): self.augmentations are arbitrary user nn.Modules applied before
    # normalization (and record_snapshot/get_snapshot raise NotImplementedError in
    # the torch module); they have no generic Pallas equivalent here.
    return out, mask_batch


if __name__ == "__main__":
    key = jax.random.PRNGKey(0)

    # Small NHWC uint8 batch consistent with the module (W multiple of 128 for the
    # lane-dense fast path).
    N, H, W, C = 2, 32, 128, 3
    k1, k2 = jax.random.split(key)
    image_batch = jax.random.randint(
        k1, (N, H, W, C), 0, 256, dtype=jnp.int32).astype(jnp.uint8)
    mask_batch = jax.random.randint(
        k2, (N, H, W), 0, 2, dtype=jnp.int32).astype(jnp.uint8)

    out, mask_out = no_loader_forward(image_batch, mask_batch)
    out = jax.block_until_ready(out)

    # Pure-JAX reference mirroring the torch module exactly.
    mean = jnp.array([0.485, 0.456, 0.406], jnp.float32)
    std = jnp.array([0.229, 0.224, 0.225], jnp.float32)
    ref = jnp.transpose(image_batch.astype(jnp.float32) / 255.0, (0, 3, 1, 2))
    ref = (ref - mean[None, :, None, None]) / std[None, :, None, None]

    assert out.shape == (N, C, H, W) and out.dtype == jnp.float32
    assert mask_out is mask_batch
    assert jnp.allclose(out, ref, atol=1e-5, rtol=1e-5)
    print("KERNEL_OK")
</pallas_src>

<mosaic_0001>
module attributes {stable_mosaic.version = 11 : i64} {
  func.func @kernel(%arg0: i32, %arg1: i32, %arg2: memref<3xf32, #tpu.memory_space<smem>>, %arg3: memref<3xf32, #tpu.memory_space<smem>>, %arg4: memref<1x32x384xi8, #tpu.memory_space<vmem>>, %arg5: memref<384x384xbf16, #tpu.memory_space<vmem>>, %arg6: memref<1x3x32x128xf32, #tpu.memory_space<vmem>>) attributes {dimension_semantics = [#tpu.dimension_semantics<parallel>, #tpu.dimension_semantics<parallel>], iteration_bounds = array<i64: 2, 1>, scalar_prefetch = 0 : i64, scratch_operands = 0 : i64, tpu.core_type = #tpu.core_type<tc>, window_params = [{transform_indices = @transform_0, window_bounds = array<i64: 3>}, {transform_indices = @transform_1, window_bounds = array<i64: 3>}, {transform_indices = @transform_2, window_bounds = array<i64: 1, 32, 384>}, {pipeline_mode = #tpu.pipeline_mode<synchronous>, transform_indices = @transform_3, window_bounds = array<i64: 384, 384>}, {transform_indices = @transform_4, window_bounds = array<i64: 1, 3, 32, 128>}]} {
    %c0 = arith.constant 0 : index
    %c0_0 = arith.constant 0 : index
    %0 = vector.load %arg5[%c0, %c0_0] : memref<384x384xbf16, #tpu.memory_space<vmem>>, vector<384x384xbf16>
    %c0_1 = arith.constant 0 : index
    %c0_2 = arith.constant 0 : index
    %c0_3 = arith.constant 0 : index
    %1 = vector.load %arg4[%c0_1, %c0_2, %c0_3] : memref<1x32x384xi8, #tpu.memory_space<vmem>>, vector<1x32x384xi8>
    %2 = vector.shape_cast %1 : vector<1x32x384xi8> to vector<32x384xi8>
    %3 = arith.uitofp %2 : vector<32x384xi8> to vector<32x384xf32>
    %4 = arith.truncf %3 : vector<32x384xf32> to vector<32x384xbf16>
    %cst = arith.constant dense<0.000000e+00> : vector<32x384xf32>
    %5 = tpu.matmul %4, %0, %cst {dimension_numbers = #tpu.dot_dimension_numbers<[1], [0], [0], [1], [0, 0, 1, 1], [], []>} : vector<32x384xbf16>, vector<384x384xbf16>, vector<32x384xf32> -> vector<32x384xf32>
    %6 = vector.extract_strided_slice %5 {offsets = [0, 0], sizes = [32, 128], strides = [1, 1]} : vector<32x384xf32> to vector<32x128xf32>
    %c0_4 = arith.constant 0 : index
    %7 = memref.load %arg2[%c0_4] : memref<3xf32, #tpu.memory_space<smem>>
    %8 = vector.broadcast %7 : f32 to vector<32x128xf32>
    %9 = arith.mulf %6, %8 : vector<32x128xf32>
    %c0_5 = arith.constant 0 : index
    %10 = memref.load %arg3[%c0_5] : memref<3xf32, #tpu.memory_space<smem>>
    %11 = vector.broadcast %10 : f32 to vector<32x128xf32>
    %12 = arith.addf %9, %11 : vector<32x128xf32>
    %c0_6 = arith.constant 0 : index
    %c0_7 = arith.constant 0 : index
    %c0_8 = arith.constant 0 : index
    %c0_9 = arith.constant 0 : index
    %13 = vector.load %arg6[%c0_6, %c0_7, %c0_8, %c0_9] : memref<1x3x32x128xf32, #tpu.memory_space<vmem>>, vector<1x1x32x128xf32>
    %14 = vector.shape_cast %13 : vector<1x1x32x128xf32> to vector<32x128xf32>
    %15 = vector.shape_cast %12 : vector<32x128xf32> to vector<1x1x32x128xf32>
    tpu.vector_store %arg6[%c0_6, %c0_7, %c0_8, %c0_9], %15 {strides = array<i32>} : memref<1x3x32x128xf32, #tpu.memory_space<vmem>>, vector<1x1x32x128xf32>,
    %16 = vector.extract_strided_slice %5 {offsets = [0, 128], sizes = [32, 128], strides = [1, 1]} : vector<32x384xf32> to vector<32x128xf32>
    %c1 = arith.constant 1 : index
    %17 = memref.load %arg2[%c1] : memref<3xf32, #tpu.memory_space<smem>>
    %18 = vector.broadcast %17 : f32 to vector<32x128xf32>
    %19 = arith.mulf %16, %18 : vector<32x128xf32>
    %c1_10 = arith.constant 1 : index
    %20 = memref.load %arg3[%c1_10] : memref<3xf32, #tpu.memory_space<smem>>
    %21 = vector.broadcast %20 : f32 to vector<32x128xf32>
    %22 = arith.addf %19, %21 : vector<32x128xf32>
    %c0_11 = arith.constant 0 : index
    %c1_12 = arith.constant 1 : index
    %c0_13 = arith.constant 0 : index
    %c0_14 = arith.constant 0 : index
    %23 = vector.load %arg6[%c0_11, %c1_12, %c0_13, %c0_14] : memref<1x3x32x128xf32, #tpu.memory_space<vmem>>, vector<1x1x32x128xf32>
    %24 = vector.shape_cast %23 : vector<1x1x32x128xf32> to vector<32x128xf32>
    %25 = vector.shape_cast %22 : vector<32x128xf32> to vector<1x1x32x128xf32>
    tpu.vector_store %arg6[%c0_11, %c1_12, %c0_13, %c0_14], %25 {strides = array<i32>} : memref<1x3x32x128xf32, #tpu.memory_space<vmem>>, vector<1x1x32x128xf32>,
    %26 = vector.extract_strided_slice %5 {offsets = [0, 256], sizes = [32, 128], strides = [1, 1]} : vector<32x384xf32> to vector<32x128xf32>
    %c2 = arith.constant 2 : index
    %27 = memref.load %arg2[%c2] : memref<3xf32, #tpu.memory_space<smem>>
    %28 = vector.broadcast %27 : f32 to vector<32x128xf32>
    %29 = arith.mulf %26, %28 : vector<32x128xf32>
    %c2_15 = arith.constant 2 : index
    %30 = memref.load %arg3[%c2_15] : memref<3xf32, #tpu.memory_space<smem>>
    %31 = vector.broadcast %30 : f32 to vector<32x128xf32>
    %32 = arith.addf %29, %31 : vector<32x128xf32>
    %c0_16 = arith.constant 0 : index
    %c2_17 = arith.constant 2 : index
    %c0_18 = arith.constant 0 : index
    %c0_19 = arith.constant 0 : index
    %33 = vector.load %arg6[%c0_16, %c2_17, %c0_18, %c0_19] : memref<1x3x32x128xf32, #tpu.memory_space<vmem>>, vector<1x1x32x128xf32>
    %34 = vector.shape_cast %33 : vector<1x1x32x128xf32> to vector<32x128xf32>
    %35 = vector.shape_cast %32 : vector<32x128xf32> to vector<1x1x32x128xf32>
    tpu.vector_store %arg6[%c0_16, %c2_17, %c0_18, %c0_19], %35 {strides = array<i32>} : memref<1x3x32x128xf32, #tpu.memory_space<vmem>>, vector<1x1x32x128xf32>,
    return
  }
  func.func @transform_0(%arg0: i32, %arg1: i32) -> i32 {
    %c0_i32 = arith.constant 0 : i32
    %c0_i32_0 = arith.constant 0 : i32
    return %c0_i32 : i32
  }
  func.func @transform_1(%arg0: i32, %arg1: i32) -> i32 {
    %c0_i32 = arith.constant 0 : i32
    %c0_i32_0 = arith.constant 0 : i32
    return %c0_i32 : i32
  }
  func.func @transform_2(%arg0: i32, %arg1: i32) -> (i32, i32, i32) {
    %c0_i32 = arith.constant 0 : i32
    %c0_i32_0 = arith.constant 0 : i32
    return %arg0, %arg1, %c0_i32 : i32, i32, i32
  }
  func.func @transform_3(%arg0: i32, %arg1: i32) -> (i32, i32) {
    %c0_i32 = arith.constant 0 : i32
    %c0_i32_0 = arith.constant 0 : i32
    %c0_i32_1 = arith.constant 0 : i32
    return %c0_i32, %c0_i32_0 : i32, i32
  }
  func.func @transform_4(%arg0: i32, %arg1: i32) -> (i32, i32, i32, i32) {
    %c0_i32 = arith.constant 0 : i32
    %c0_i32_0 = arith.constant 0 : i32
    %c0_i32_1 = arith.constant 0 : i32
    return %arg0, %c0_i32, %arg1, %c0_i32_0 : i32, i32, i32, i32
  }
}

</mosaic_0001>

<llo_original>
// kernel: tpu_custom_call.1
$region0: #{tpu_custom_call.1}
  #allocation0 [shape = 'u32[]', space=smem, size = 0x4, offset = 0x4, fixed_abs, tag = 'smem constant byte address 0x4 - core index']
  #allocation1 [shape = 'u32[144,128]{1,0:T(1,128)}', space=vmem, size = 0x12000, scoped, tag = 'internal scratch']
  %s0 = inlined_call_operand.hbm [shape: f32[3], index: 0, kind: input, shape index: {}]
  %s1 = inlined_call_operand.vmem [shape: f32[3], index: 1, kind: input, shape index: {}]
  %s2 = inlined_call_operand.hbm [shape: u8[2,32,384], index: 2, kind: input, shape index: {}]
  %s3 = inlined_call_operand.hbm [shape: bf16[384,384], index: 3, kind: input, shape index: {}]
  %s4 = inlined_call_operand.hbm [shape: f32[2,3,32,128], index: 4, kind: output, shape index: {}]
  %s5 = sld [smem:[#allocation0]]
  $region65: #{tpu_custom_call.1} parent=0
    _
  %s7 = ssub.s32 1, %s5
  %s8 = scalar_select 0, %s7, %s5
  $region1: #{tpu_custom_call.1} parent=0
    #allocation2 [shape = 'u8[512]{0}', space=smem, size = 0x200, scoped, tag = 'input window, operand 0, single buffered']
    #allocation3 [shape = 's32[2]{0}', space=sflag, size = 0x8, scoped, tag = 'scoped memory for tpu_custom_call.1']
    #allocation4 [shape = 's32[2]{0}', space=sflag, size = 0x8, scoped, tag = 'scoped memory for tpu_custom_call.1']
    #allocation5 [shape = 's32[2]{0}', space=sflag, size = 0x8, scoped, tag = 'scoped memory for tpu_custom_call.1']
    #allocation6 [shape = 's32[2]{0}', space=sflag, size = 0x8, scoped, tag = 'scoped memory for tpu_custom_call.1']
    #allocation7 [shape = 'u8[512]{0}', space=smem, size = 0x200, scoped, tag = 'input window, operand 1, single buffered']
    #allocation8 [shape = 'u8[24576]{0}', space=vmem, size = 0x6000, scoped, tag = 'input window, operand 2']
    #allocation9 [shape = 'u8[294912]{0}', space=vmem, size = 0x48000, scoped, tag = 'input window, operand 3, single buffered']
    #allocation10 [shape = 's32[1]{0}', space=sflag, size = 0x4, scoped, tag = 'scoped memory for tpu_custom_call.1']
    #allocation11 [shape = 'u8[98304]{0}', space=vmem, size = 0x18000, scoped, tag = 'output window, operand 0']
    %9 = vsyncpa [#allocation5], 0
    %10 = vsyncpa [#allocation6], 0
    %11 = vsyncpa [#allocation3], 0
    %s12 = scalar_lea.sflag [#allocation3], 1
    %13 = vsyncpa %s12, 0
    %14 = vsyncpa [#allocation10], 0
    %15 = vsyncpa [#allocation4], 0
    %s16 = scalar_lea.sflag [#allocation4], 1
    %17 = vsyncpa %s16, 0
    loop: start=0, step=1, limit=4
    $region2: #{tpu_custom_call.1} parent=1 // loop_pre_header
      _
    $region3: #{tpu_custom_call.1} parent=1 // loop_header
      %s19 = sphi 0, %s23
      %p20 = scmp.ge.s32.totalorder %s19, 4
      %s26 = sphi 0, %s38
      %s27 = sphi 0, %s34
      %s28 = sphi 0, %s26
      %s29 = sphi 0, %s27
      %s30 = sphi 0, %s28
      %s31 = sphi 0, %s29
      %s39 = sphi 0, %s39
      %s41 = sphi 0, %s39
      %s42 = sphi 0, %s41
      %s56 = sphi 0, %s42
      %s60 = sphi 0, %s60
      %s62 = sphi 0, %s60
      %s63 = sphi 0, %s62
      %s77 = sphi 0, %s63
      %s85 = sphi 0, %s87
      %s88 = sphi 0, %s85
      %s89 = sphi 0, %s88
      %s105 = sphi 0, %s89
      %s109 = sphi 0, %s109
      %s111 = sphi 0, %s109
      %s112 = sphi 0, %s111
      %s126 = sphi 0, %s112
      %s134 = sphi 0, %s136
      %s137 = sphi 0, %s134
      %s138 = sphi 0, %s137
      %s154 = sphi 0, %s138
    $region4: #{tpu_custom_call.1} parent=1 // loop_header_branch
      %22 = sbr.rel (%p20) target = $region8
    $region5: #{tpu_custom_call.1} parent=1 // loop_body
      %s24 = ssub.s32 %s19, 1
      %s25 = ssub.s32 %s19, 2
      %s32 = sadd.s32 1, %s27
      %p33 = scmp.ge.s32.totalorder %s32, 1
      %s34 = scalar_select %p33, 0, %s32
      %s35 = sadd.s32 1, %s26
      %s36 = scalar_select %p33, %s35, %s26
      %p37 = scmp.ge.s32.totalorder %s36, 2
      %s38 = scalar_select %p37, 0, %s36
      %s40 = sadd.s32 %s39, 1
      %p43 = scmp.eq.s32.totalorder %s19, 1
      %p44 = scmp.ne.s32.totalorder %s39, %s41
      %p45 = scmp.eq.s32.totalorder %s19, 0
      %p46 = por %p44, %p45
      %p47 = scmp.ne.s32.totalorder %s39, %s41
      %p48 = scmp.eq.s32.totalorder %s24, 1
      %p49 = por %p47, %p48
      %p50 = scmp.ne.s32.totalorder %s41, %s42
      %p51 = scmp.eq.s32.totalorder %s24, 0
      %p52 = por %p50, %p51
      %p53 = scmp.ne.s32.totalorder %s41, %s42
      %p54 = scmp.eq.s32.totalorder %s25, 1
      %p55 = por %p53, %p54
      %p57 = scmp.ne.s32.totalorder %s42, %s56
      %p58 = scmp.eq.s32.totalorder %s25, 0
      %p59 = por %p57, %p58
      %s61 = sadd.s32 %s60, 1
      %p64 = scmp.eq.s32.totalorder %s19, 1
      %p65 = scmp.ne.s32.totalorder %s60, %s62
      %p66 = scmp.eq.s32.totalorder %s19, 0
      %p67 = por %p65, %p66
      %p68 = scmp.ne.s32.totalorder %s60, %s62
      %p69 = scmp.eq.s32.totalorder %s24, 1
      %p70 = por %p68, %p69
      %p71 = scmp.ne.s32.totalorder %s62, %s63
      %p72 = scmp.eq.s32.totalorder %s24, 0
      %p73 = por %p71, %p72
      %p74 = scmp.ne.s32.totalorder %s62, %s63
      %p75 = scmp.eq.s32.totalorder %s25, 1
      %p76 = por %p74, %p75
      %p78 = scmp.ne.s32.totalorder %s63, %s77
      %p79 = scmp.eq.s32.totalorder %s25, 0
      %p80 = por %p78, %p79
      %s81 = ssub.s32 %s26, %s38
      %s82 = ssub.s32 %s27, %s34
      %s83 = sor.u32 %s81, %s82
      %p84 = scmp.eq.s32.totalorder %s83, 0
      %s86 = sadd.s32 %s85, 1
      %s87 = scalar_select %p84, %s85, %s86
      %p90 = pneg %p84
      %p91 = scmp.eq.s32.totalorder %s19, 1
      %p92 = por %p90, %p91
      %p93 = scmp.ne.s32.totalorder %s85, %s88
      %p94 = scmp.eq.s32.totalorder %s19, 0
      %p95 = por %p93, %p94
      %p96 = scmp.ne.s32.totalorder %s85, %s88
      %p97 = scmp.eq.s32.totalorder %s24, 1
      %p98 = por %p96, %p97
      %p99 = scmp.ne.s32.totalorder %s88, %s89
      %p100 = scmp.eq.s32.totalorder %s24, 0
      %p101 = por %p99, %p100
      %p102 = scmp.ne.s32.totalorder %s88, %s89
      %p103 = scmp.eq.s32.totalorder %s25, 1
      %p104 = por %p102, %p103
      %p106 = scmp.ne.s32.totalorder %s89, %s105
      %p107 = scmp.eq.s32.totalorder %s25, 0
      %p108 = por %p106, %p107
      %s110 = sadd.s32 %s109, 1
      %p113 = scmp.eq.s32.totalorder %s19, 1
      %p114 = scmp.ne.s32.totalorder %s109, %s111
      %p115 = scmp.eq.s32.totalorder %s19, 0
      %p116 = por %p114, %p115
      %p117 = scmp.ne.s32.totalorder %s109, %s111
      %p118 = scmp.eq.s32.totalorder %s24, 1
      %p119 = por %p117, %p118
      %p120 = scmp.ne.s32.totalorder %s111, %s112
      %p121 = scmp.eq.s32.totalorder %s24, 0
      %p122 = por %p120, %p121
      %p123 = scmp.ne.s32.totalorder %s111, %s112
      %p124 = scmp.eq.s32.totalorder %s25, 1
      %p125 = por %p123, %p124
      %p127 = scmp.ne.s32.totalorder %s112, %s126
      %p128 = scmp.eq.s32.totalorder %s25, 0
      %p129 = por %p127, %p128
      %s130 = ssub.s32 %s26, %s38
      %s131 = ssub.s32 %s27, %s34
      %s132 = sor.u32 %s130, %s131
      %p133 = scmp.eq.s32.totalorder %s132, 0
      %s135 = sadd.s32 %s134, 1
      %s136 = scalar_select %p133, %s134, %s135
      %p139 = pneg %p133
      %p140 = scmp.eq.s32.totalorder %s19, 1
      %p141 = por %p139, %p140
      %p142 = scmp.ne.s32.totalorder %s134, %s137
      %p143 = scmp.eq.s32.totalorder %s19, 0
      %p144 = por %p142, %p143
      %p145 = scmp.ne.s32.totalorder %s134, %s137
      %p146 = scmp.eq.s32.totalorder %s24, 1
      %p147 = por %p145, %p146
      %p148 = scmp.ne.s32.totalorder %s137, %s138
      %p149 = scmp.eq.s32.totalorder %s24, 0
      %p150 = por %p148, %p149
      %p151 = scmp.ne.s32.totalorder %s137, %s138
      %p152 = scmp.eq.s32.totalorder %s25, 1
      %p153 = por %p151, %p152
      %p155 = scmp.ne.s32.totalorder %s138, %s154
      %p156 = scmp.eq.s32.totalorder %s25, 0
      %p157 = por %p155, %p156
      %p158 = scmp.le.s32.totalorder 1, %s19
      %p159 = scmp.lt.s32.totalorder %s19, 3
      %p160 = pnand %p158, %p159
      %p161 = pneg %p160
      // Predicated region
      $region9: #{tpu_custom_call.1} parent=5 // pred_check
        _
      $region10: #{tpu_custom_call.1} parent=5 // pred_check_branch
        %163 = sbr.rel (%p160) target = $region12
      $region11: #{tpu_custom_call.1} parent=5 // pred_region
        %s164 = ssub.s32 %s19, 1
        // Predicated region
        $region13: #{tpu_custom_call.1} parent=11 // pred_check
          %p165 = pneg %p52
        $region14: #{tpu_custom_call.1} parent=11 // pred_check_branch
          %167 = sbr.rel (%p165) target = $region16
        $region15: #{tpu_custom_call.1} parent=11 // pred_region
          %s169 = ssub.s32 16, 16
          %170 = vsyncadd [#allocation5], %s169
          %173 = dma.hbm_to_smem %s0, 16, [#allocation2], [#allocation5]
        $region16: #{tpu_custom_call.1} parent=11 // pred_fallthru
          _
        // Predicated region
        $region17: #{tpu_custom_call.1} parent=11 // pred_check
          %p174 = pneg %p73
        $region18: #{tpu_custom_call.1} parent=11 // pred_check_branch
          %176 = sbr.rel (%p174) target = $region20
        $region19: #{tpu_custom_call.1} parent=11 // pred_region
          %s178 = ssub.s32 16, 16
          %179 = vsyncadd [#allocation6], %s178
          %s181 = sshll.u32 %s1, 4
          %s182 = int_to_ptr.vmem [resolvable:$true] %s181
          %184 = dma.vmem_to_smem %s182, 16, [#allocation7], [#allocation6]
        $region20: #{tpu_custom_call.1} parent=11 // pred_fallthru
          _
        // Predicated region
        $region21: #{tpu_custom_call.1} parent=11 // pred_check
          %p185 = pneg %p122
        $region22: #{tpu_custom_call.1} parent=11 // pred_check_branch
          %187 = sbr.rel (%p185) target = $region24
        $region23: #{tpu_custom_call.1} parent=11 // pred_region
          %s189 = ssub.s32 9216, 9216
          %190 = vsyncadd [#allocation10], %s189
          %s191 = sshll.u32 [#allocation9], 4
          %s192 = int_to_ptr.vmem [resolvable:$true] %s191
          %197 = dma.hbm_to_vmem [thread:$0]  %s3, 9216, %s192, [#allocation10], 192, 192, 12
        $region24: #{tpu_custom_call.1} parent=11 // pred_fallthru
          _
      $region12: #{tpu_custom_call.1} parent=5 // pred_fallthru
        _
      %p198 = scmp.lt.s32.totalorder %s19, 2
      // Predicated region
      $region25: #{tpu_custom_call.1} parent=5 // pred_check
        %p199 = pneg %p198
      $region26: #{tpu_custom_call.1} parent=5 // pred_check_branch
        %201 = sbr.rel (%p199) target = $region28
      $region27: #{tpu_custom_call.1} parent=5 // pred_region
        // Predicated region
        $region29: #{tpu_custom_call.1} parent=27 // pred_check
          %p202 = pneg %p95
        $region30: #{tpu_custom_call.1} parent=27 // pred_check_branch
          %204 = sbr.rel (%p202) target = $region32
        $region31: #{tpu_custom_call.1} parent=27 // pred_region
          %s205 = sand.u32 %s85, 1
          %s206 = scalar_lea.sflag [#allocation3], %s205
          %s207 = sand.u32 %s85, 1
          %s208 = smul.addr %s207, 24
          %s209 = scalar_lea.vmem [#allocation8], %s208
          %s211 = ssub.s32 384, 384
          %212 = vsyncadd %s206, %s211
          %s213 = smul.addr %s27, 3
          %s214 = smul.addr %s26, 3
          %s215 = sadd.s32 %s213, %s214
          %s216 = smul.addr %s215, 128
          %s217 = scalar_lea.hbm %s2, %s216
          %s219 = sshll.u32 %s209, 4
          %s220 = int_to_ptr.vmem [resolvable:$true] %s219
          %222 = dma.hbm_to_vmem [thread:$0]  %s217, 384, %s220, %s206
        $region32: #{tpu_custom_call.1} parent=27 // pred_fallthru
          _
      $region28: #{tpu_custom_call.1} parent=5 // pred_fallthru
        _
      %p223 = scmp.le.s32.totalorder 1, %s19
      %p224 = scmp.lt.s32.totalorder %s19, 3
      %p225 = pnand %p223, %p224
      %p226 = pneg %p225
      // Predicated region
      $region33: #{tpu_custom_call.1} parent=5 // pred_check
        _
      $region34: #{tpu_custom_call.1} parent=5 // pred_check_branch
        %228 = sbr.rel (%p225) target = $region36
      $region35: #{tpu_custom_call.1} parent=5 // pred_region
        %s229 = ssub.s32 %s19, 1
        // Predicated region
        $region37: #{tpu_custom_call.1} parent=35 // pred_check
          %p230 = pneg %p52
        $region38: #{tpu_custom_call.1} parent=35 // pred_check_branch
          %232 = sbr.rel (%p230) target = $region40
        $region39: #{tpu_custom_call.1} parent=35 // pred_region
          %233 = dma.done [#allocation5], 16
        $region40: #{tpu_custom_call.1} parent=35 // pred_fallthru
          _
        // Predicated region
        $region41: #{tpu_custom_call.1} parent=35 // pred_check
          %p234 = pneg %p73
        $region42: #{tpu_custom_call.1} parent=35 // pred_check_branch
          %236 = sbr.rel (%p234) target = $region44
        $region43: #{tpu_custom_call.1} parent=35 // pred_region
          %237 = dma.done [#allocation6], 16
        $region44: #{tpu_custom_call.1} parent=35 // pred_fallthru
          _
        %s238 = sand.u32 %s88, 1
        %s239 = scalar_lea.sflag [#allocation3], %s238
        %s240 = sand.u32 %s88, 1
        %s241 = smul.addr %s240, 24
        %s242 = scalar_lea.vmem [#allocation8], %s241
        // Predicated region
        $region45: #{tpu_custom_call.1} parent=35 // pred_check
          %p243 = pneg %p101
        $region46: #{tpu_custom_call.1} parent=35 // pred_check_branch
          %245 = sbr.rel (%p243) target = $region48
        $region47: #{tpu_custom_call.1} parent=35 // pred_region
          %246 = dma.done %s239, 384
        $region48: #{tpu_custom_call.1} parent=35 // pred_fallthru
          _
        // Predicated region
        $region49: #{tpu_custom_call.1} parent=35 // pred_check
          %p247 = pneg %p122
        $region50: #{tpu_custom_call.1} parent=35 // pred_check_branch
          %249 = sbr.rel (%p247) target = $region52
        $region51: #{tpu_custom_call.1} parent=35 // pred_region
          %250 = dma.done [#allocation10], 9216
        $region52: #{tpu_custom_call.1} parent=35 // pred_fallthru
          _
        %251 = sfence
        %p252 = pneg %p52
        %p253 = pneg %p49
        %p254 = pneg %p73
        %p255 = pneg %p70
        %s256 = sand.u32 %s88, 1
        %s257 = scalar_lea.sflag [#allocation3], %s256
        %s258 = sand.u32 %s88, 1
        %s259 = smul.addr %s258, 24
        %s260 = scalar_lea.vmem [#allocation8], %s259
        %p261 = pneg %p101
        %p262 = pneg %p98
        %p263 = pneg %p122
        %p264 = pneg %p119
        %p265 = pneg %p150
        %p266 = pneg %p147
        %s267 = sand.u32 %s137, 1
        %s268 = scalar_lea.sflag [#allocation4], %s267
        %s269 = sand.u32 %s137, 1
        %s270 = smul.addr %s269, 96
        %s271 = scalar_lea.vmem [#allocation11], %s270
        %s272 = smul.u32 4, %s29
        %v274 = vld [vmem:[#allocation9] sm:$0xff]
        %v275 = vld [vmem:[#allocation9 + $0x8] sm:$0xf]
        %v276 = vld [vmem:[#allocation9 + $0xc] sm:$0xff]
        %v277 = vld [vmem:[#allocation9 + $0x14] sm:$0xf]
        %v278 = vld [vmem:[#allocation9 + $0x18] sm:$0xff]
        %v279 = vld [vmem:[#allocation9 + $0x20] sm:$0xf]
        %v280 = vld [vmem:[#allocation9 + $0x24] sm:$0xff]
        %v281 = vld [vmem:[#allocation9 + $0x2c] sm:$0xf]
        %v282 = vld [vmem:[#allocation9 + $0x30] sm:$0xff]
        %v283 = vld [vmem:[#allocation9 + $0x38] sm:$0xf]
        %v284 = vld [vmem:[#allocation9 + $0x3c] sm:$0xff]
        %v285 = vld [vmem:[#allocation9 + $0x44] sm:$0xf]
        %v286 = vld [vmem:[#allocation9 + $0x48] sm:$0xff]
        %v287 = vld [vmem:[#allocation9 + $0x50] sm:$0xf]
        %v288 = vld [vmem:[#allocation9 + $0x54] sm:$0xff]
        %v289 = vld [vmem:[#allocation9 + $0x5c] sm:$0xf]
        %v290 = vld [vmem:[#allocation9 + $0x60] sm:$0xff]
        %v291 = vld [vmem:[#allocation9 + $0x68] sm:$0xf]
        %v292 = vld [vmem:[#allocation9 + $0x6c] sm:$0xff]
        %v293 = vld [vmem:[#allocation9 + $0x74] sm:$0xf]
        %v294 = vld [vmem:[#allocation9 + $0x78] sm:$0xff]
        %v295 = vld [vmem:[#allocation9 + $0x80] sm:$0xf]
        %v296 = vld [vmem:[#allocation9 + $0x84] sm:$0xff]
        %v297 = vld [vmem:[#allocation9 + $0x8c] sm:$0xf]
        %v298 = vld [vmem:[#allocation9 + $0x90] sm:$0xff]
        %v299 = vld [vmem:[#allocation9 + $0x98] sm:$0xf]
        %v300 = vld [vmem:[#allocation9 + $0x9c] sm:$0xff]
        %v301 = vld [vmem:[#allocation9 + $0xa4] sm:$0xf]
        %v302 = vld [vmem:[#allocation9 + $0xa8] sm:$0xff]
        %v303 = vld [vmem:[#allocation9 + $0xb0] sm:$0xf]
        %v304 = vld [vmem:[#allocation9 + $0xb4] sm:$0xff]
        %v305 = vld [vmem:[#allocation9 + $0xbc] sm:$0xf]
        %v306 = vld [vmem:[#allocation9 + $0xc0] sm:$0xff]
        %v307 = vld [vmem:[#allocation9 + $0xc8] sm:$0xf]
        %v308 = vld [vmem:[#allocation9 + $0xcc] sm:$0xff]
        %v309 = vld [vmem:[#allocation9 + $0xd4] sm:$0xf]
        %v310 = vld [vmem:[#allocation9 + $0xd8] sm:$0xff]
        %v311 = vld [vmem:[#allocation9 + $0xe0] sm:$0xf]
        %v312 = vld [vmem:[#allocation9 + $0xe4] sm:$0xff]
        %v313 = vld [vmem:[#allocation9 + $0xec] sm:$0xf]
        %v314 = vld [vmem:[#allocation9 + $0xf0] sm:$0xff]
        %v315 = vld [vmem:[#allocation9 + $0xf8] sm:$0xf]
        %v316 = vld [vmem:[#allocation9 + $0xfc] sm:$0xff]
        %v317 = vld [vmem:[#allocation9 + $0x104] sm:$0xf]
        %v318 = vld [vmem:[#allocation9 + $0x108] sm:$0xff]
        %v319 = vld [vmem:[#allocation9 + $0x110] sm:$0xf]
        %v320 = vld [vmem:[#allocation9 + $0x114] sm:$0xff]
        %v321 = vld [vmem:[#allocation9 + $0x11c] sm:$0xf]
        %v322 = vld [vmem:[#allocation9 + $0x120] sm:$0xff]
        %v323 = vld [vmem:[#allocation9 + $0x128] sm:$0xf]
        %v324 = vld [vmem:[#allocation9 + $0x12c] sm:$0xff]
        %v325 = vld [vmem:[#allocation9 + $0x134] sm:$0xf]
        %v326 = vld [vmem:[#allocation9 + $0x138] sm:$0xff]
        %v327 = vld [vmem:[#allocation9 + $0x140] sm:$0xf]
        %v328 = vld [vmem:[#allocation9 + $0x144] sm:$0xff]
        %v329 = vld [vmem:[#allocation9 + $0x14c] sm:$0xf]
        %v330 = vld [vmem:[#allocation9 + $0x150] sm:$0xff]
        %v331 = vld [vmem:[#allocation9 + $0x158] sm:$0xf]
        %v332 = vld [vmem:[#allocation9 + $0x15c] sm:$0xff]
        %v333 = vld [vmem:[#allocation9 + $0x164] sm:$0xf]
        %v334 = vld [vmem:[#allocation9 + $0x168] sm:$0xff]
        %v335 = vld [vmem:[#allocation9 + $0x170] sm:$0xf]
        %v336 = vld [vmem:[#allocation9 + $0x174] sm:$0xff]
        %v337 = vld [vmem:[#allocation9 + $0x17c] sm:$0xf]
        %v338 = vld [vmem:[#allocation9 + $0x180] sm:$0xff]
        %v339 = vld [vmem:[#allocation9 + $0x188] sm:$0xf]
        %v340 = vld [vmem:[#allocation9 + $0x18c] sm:$0xff]
        %v341 = vld [vmem:[#allocation9 + $0x194] sm:$0xf]
        %v342 = vld [vmem:[#allocation9 + $0x198] sm:$0xff]
        %v343 = vld [vmem:[#allocation9 + $0x1a0] sm:$0xf]
        %v344 = vld [vmem:[#allocation9 + $0x1a4] sm:$0xff]
        %v345 = vld [vmem:[#allocation9 + $0x1ac] sm:$0xf]
        %v346 = vld [vmem:[#allocation9 + $0x1b0] sm:$0xff]
        %v347 = vld [vmem:[#allocation9 + $0x1b8] sm:$0xf]
        %v348 = vld [vmem:[#allocation9 + $0x1bc] sm:$0xff]
        %v349 = vld [vmem:[#allocation9 + $0x1c4] sm:$0xf]
        %v350 = vld [vmem:[#allocation9 + $0x1c8] sm:$0xff]
        %v351 = vld [vmem:[#allocation9 + $0x1d0] sm:$0xf]
        %v352 = vld [vmem:[#allocation9 + $0x1d4] sm:$0xff]
        %v353 = vld [vmem:[#allocation9 + $0x1dc] sm:$0xf]
        %v354 = vld [vmem:[#allocation9 + $0x1e0] sm:$0xff]
        %v355 = vld [vmem:[#allocation9 + $0x1e8] sm:$0xf]
        %v356 = vld [vmem:[#allocation9 + $0x1ec] sm:$0xff]
        %v357 = vld [vmem:[#allocation9 + $0x1f4] sm:$0xf]
        %v358 = vld [vmem:[#allocation9 + $0x1f8] sm:$0xff]
        %v359 = vld [vmem:[#allocation9 + $0x200] sm:$0xf]
        %v360 = vld [vmem:[#allocation9 + $0x204] sm:$0xff]
        %v361 = vld [vmem:[#allocation9 + $0x20c] sm:$0xf]
        %v362 = vld [vmem:[#allocation9 + $0x210] sm:$0xff]
        %v363 = vld [vmem:[#allocation9 + $0x218] sm:$0xf]
        %v364 = vld [vmem:[#allocation9 + $0x21c] sm:$0xff]
        %v365 = vld [vmem:[#allocation9 + $0x224] sm:$0xf]
        %v366 = vld [vmem:[#allocation9 + $0x228] sm:$0xff]
        %v367 = vld [vmem:[#allocation9 + $0x230] sm:$0xf]
        %v368 = vld [vmem:[#allocation9 + $0x234] sm:$0xff]
        %v369 = vld [vmem:[#allocation9 + $0x23c] sm:$0xf]
        %v370 = vld [vmem:[%s242] sm:$0xff]
        %v371 = vld [vmem:[%s242 + $0x8] sm:$0xff]
        %v372 = vld [vmem:[%s242 + $0x10] sm:$0xff]
        %v373 = vunpack.c.l.u8.bf16 %v370
        %v374 = vunpack.c.l.u8.bf16 %v371
        %v375 = vunpack.c.l.u8.bf16 %v372
        %v376 = vunpack.c.h.u8.bf16 %v370
        %v377 = vunpack.c.h.u8.bf16 %v371
        %v378 = vunpack.c.h.u8.bf16 %v372
        %v475 = vunpack.c.l.b16 %v274
        %v476 = vunpack.c.h.b16 %v274
        %v477 = vunpack.c.l.b16 %v275
        %v478 = vunpack.c.l.b16 %v276
        %v479 = vunpack.c.h.b16 %v276
        %v480 = vunpack.c.l.b16 %v277
        %v481 = vunpack.c.l.b16 %v278
        %v482 = vunpack.c.h.b16 %v278
        %v483 = vunpack.c.l.b16 %v279
        %v484 = vunpack.c.l.b16 %v280
        %v485 = vunpack.c.h.b16 %v280
        %v486 = vunpack.c.l.b16 %v281
        %v487 = vunpack.c.l.b16 %v282
        %v488 = vunpack.c.h.b16 %v282
        %v489 = vunpack.c.l.b16 %v283
        %v490 = vunpack.c.l.b16 %v284
        %v491 = vunpack.c.h.b16 %v284
        %v492 = vunpack.c.l.b16 %v285
        %v493 = vunpack.c.l.b16 %v286
        %v494 = vunpack.c.h.b16 %v286
        %v495 = vunpack.c.l.b16 %v287
        %v496 = vunpack.c.l.b16 %v288
        %v497 = vunpack.c.h.b16 %v288
        %v498 = vunpack.c.l.b16 %v289
        %v499 = vunpack.c.l.b16 %v290
        %v500 = vunpack.c.h.b16 %v290
        %v501 = vunpack.c.l.b16 %v291
        %v502 = vunpack.c.l.b16 %v292
        %v503 = vunpack.c.h.b16 %v292
        %v504 = vunpack.c.l.b16 %v293
        %v505 = vunpack.c.l.b16 %v294
        %v506 = vunpack.c.h.b16 %v294
        %v507 = vunpack.c.l.b16 %v295
        %v508 = vunpack.c.l.b16 %v296
        %v509 = vunpack.c.h.b16 %v296
        %v510 = vunpack.c.l.b16 %v297
        %v511 = vunpack.c.l.b16 %v298
        %v512 = vunpack.c.h.b16 %v298
        %v513 = vunpack.c.l.b16 %v299
        %v514 = vunpack.c.l.b16 %v300
        %v515 = vunpack.c.h.b16 %v300
        %v516 = vunpack.c.l.b16 %v301
        %v517 = vunpack.c.l.b16 %v302
        %v518 = vunpack.c.h.b16 %v302
        %v519 = vunpack.c.l.b16 %v303
        %v520 = vunpack.c.l.b16 %v304
        %v521 = vunpack.c.h.b16 %v304
        %v522 = vunpack.c.l.b16 %v305
        %v523 = vunpack.c.l.b16 %v306
        %v524 = vunpack.c.h.b16 %v306
        %v525 = vunpack.c.l.b16 %v307
        %v526 = vunpack.c.l.b16 %v308
        %v527 = vunpack.c.h.b16 %v308
        %v528 = vunpack.c.l.b16 %v309
        %v529 = vunpack.c.l.b16 %v310
        %v530 = vunpack.c.h.b16 %v310
        %v531 = vunpack.c.l.b16 %v311
        %v532 = vunpack.c.l.b16 %v312
        %v533 = vunpack.c.h.b16 %v312
        %v534 = vunpack.c.l.b16 %v313
        %v535 = vunpack.c.l.b16 %v314
        %v536 = vunpack.c.h.b16 %v314
        %v537 = vunpack.c.l.b16 %v315
        %v538 = vunpack.c.l.b16 %v316
        %v539 = vunpack.c.h.b16 %v316
        %v540 = vunpack.c.l.b16 %v317
        %v541 = vunpack.c.l.b16 %v318
        %v542 = vunpack.c.h.b16 %v318
        %v543 = vunpack.c.l.b16 %v319
        %v544 = vunpack.c.l.b16 %v320
        %v545 = vunpack.c.h.b16 %v320
        %v546 = vunpack.c.l.b16 %v321
        %v547 = vunpack.c.l.b16 %v322
        %v548 = vunpack.c.h.b16 %v322
        %v549 = vunpack.c.l.b16 %v323
        %v550 = vunpack.c.l.b16 %v324
        %v551 = vunpack.c.h.b16 %v324
        %v552 = vunpack.c.l.b16 %v325
        %v553 = vunpack.c.l.b16 %v326
        %v554 = vunpack.c.h.b16 %v326
        %v555 = vunpack.c.l.b16 %v327
        %v556 = vunpack.c.l.b16 %v328
        %v557 = vunpack.c.h.b16 %v328
        %v558 = vunpack.c.l.b16 %v329
        %v559 = vunpack.c.l.b16 %v330
        %v560 = vunpack.c.h.b16 %v330
        %v561 = vunpack.c.l.b16 %v331
        %v562 = vunpack.c.l.b16 %v332
        %v563 = vunpack.c.h.b16 %v332
        %v564 = vunpack.c.l.b16 %v333
        %v565 = vunpack.c.l.b16 %v334
        %v566 = vunpack.c.h.b16 %v334
        %v567 = vunpack.c.l.b16 %v335
        %v568 = vunpack.c.l.b16 %v336
        %v569 = vunpack.c.h.b16 %v336
        %v570 = vunpack.c.l.b16 %v337
        %v571 = vunpack.c.l.b16 %v338
        %v572 = vunpack.c.h.b16 %v338
        %v573 = vunpack.c.l.b16 %v339
        %v574 = vunpack.c.l.b16 %v340
        %v575 = vunpack.c.h.b16 %v340
        %v576 = vunpack.c.l.b16 %v341
        %v577 = vunpack.c.l.b16 %v342
        %v578 = vunpack.c.h.b16 %v342
        %v579 = vunpack.c.l.b16 %v343
        %v580 = vunpack.c.l.b16 %v344
        %v581 = vunpack.c.h.b16 %v344
        %v582 = vunpack.c.l.b16 %v345
        %v583 = vunpack.c.l.b16 %v346
        %v584 = vunpack.c.h.b16 %v346
        %v585 = vunpack.c.l.b16 %v347
        %v586 = vunpack.c.l.b16 %v348
        %v587 = vunpack.c.h.b16 %v348
        %v588 = vunpack.c.l.b16 %v349
        %v589 = vunpack.c.l.b16 %v350
        %v590 = vunpack.c.h.b16 %v350
        %v591 = vunpack.c.l.b16 %v351
        %v592 = vunpack.c.l.b16 %v352
        %v593 = vunpack.c.h.b16 %v352
        %v594 = vunpack.c.l.b16 %v353
        %v595 = vunpack.c.l.b16 %v354
        %v596 = vunpack.c.h.b16 %v354
        %v597 = vunpack.c.l.b16 %v355
        %v598 = vunpack.c.l.b16 %v356
        %v599 = vunpack.c.h.b16 %v356
        %v600 = vunpack.c.l.b16 %v357
        %v601 = vunpack.c.l.b16 %v358
        %v602 = vunpack.c.h.b16 %v358
        %v603 = vunpack.c.l.b16 %v359
        %v604 = vunpack.c.l.b16 %v360
        %v605 = vunpack.c.h.b16 %v360
        %v606 = vunpack.c.l.b16 %v361
        %v607 = vunpack.c.l.b16 %v362
        %v608 = vunpack.c.h.b16 %v362
        %v609 = vunpack.c.l.b16 %v363
        %v610 = vunpack.c.l.b16 %v364
        %v611 = vunpack.c.h.b16 %v364
        %v612 = vunpack.c.l.b16 %v365
        %v613 = vunpack.c.l.b16 %v366
        %v614 = vunpack.c.h.b16 %v366
        %v615 = vunpack.c.l.b16 %v367
        %v616 = vunpack.c.l.b16 %v368
        %v617 = vunpack.c.h.b16 %v368
        %v618 = vunpack.c.l.b16 %v369
        %v619 = vpack.c.b16 %v478, %v475
        %v620 = vpack.c.b16 %v479, %v476
        %v621 = vpack.c.b16 %v480, %v477
        %v622 = vpack.c.b16 %v484, %v481
        %v623 = vpack.c.b16 %v485, %v482
        %v624 = vpack.c.b16 %v486, %v483
        %v625 = vpack.c.b16 %v490, %v487
        %v626 = vpack.c.b16 %v491, %v488
        %v627 = vpack.c.b16 %v492, %v489
        %v628 = vpack.c.b16 %v496, %v493
        %v629 = vpack.c.b16 %v497, %v494
        %v630 = vpack.c.b16 %v498, %v495
        %v631 = vpack.c.b16 %v502, %v499
        %v632 = vpack.c.b16 %v503, %v500
        %v633 = vpack.c.b16 %v504, %v501
        %v634 = vpack.c.b16 %v508, %v505
        %v635 = vpack.c.b16 %v509, %v506
        %v636 = vpack.c.b16 %v510, %v507
        %v637 = vpack.c.b16 %v514, %v511
        %v638 = vpack.c.b16 %v515, %v512
        %v639 = vpack.c.b16 %v516, %v513
        %v640 = vpack.c.b16 %v520, %v517
        %v641 = vpack.c.b16 %v521, %v518
        %v642 = vpack.c.b16 %v522, %v519
        %v643 = vpack.c.b16 %v526, %v523
        %v644 = vpack.c.b16 %v527, %v524
        %v645 = vpack.c.b16 %v528, %v525
        %v646 = vpack.c.b16 %v532, %v529
        %v647 = vpack.c.b16 %v533, %v530
        %v648 = vpack.c.b16 %v534, %v531
        %v649 = vpack.c.b16 %v538, %v535
        %v650 = vpack.c.b16 %v539, %v536
        %v651 = vpack.c.b16 %v540, %v537
        %v652 = vpack.c.b16 %v544, %v541
        %v653 = vpack.c.b16 %v545, %v542
        %v654 = vpack.c.b16 %v546, %v543
        %v655 = vpack.c.b16 %v550, %v547
        %v656 = vpack.c.b16 %v551, %v548
        %v657 = vpack.c.b16 %v552, %v549
        %v658 = vpack.c.b16 %v556, %v553
        %v659 = vpack.c.b16 %v557, %v554
        %v660 = vpack.c.b16 %v558, %v555
        %v661 = vpack.c.b16 %v562, %v559
        %v662 = vpack.c.b16 %v563, %v560
        %v663 = vpack.c.b16 %v564, %v561
        %v664 = vpack.c.b16 %v568, %v565
        %v665 = vpack.c.b16 %v569, %v566
        %v666 = vpack.c.b16 %v570, %v567
        %v667 = vpack.c.b16 %v574, %v571
        %v668 = vpack.c.b16 %v575, %v572
        %v669 = vpack.c.b16 %v576, %v573
        %v670 = vpack.c.b16 %v580, %v577
        %v671 = vpack.c.b16 %v581, %v578
        %v672 = vpack.c.b16 %v582, %v579
        %v673 = vpack.c.b16 %v586, %v583
        %v674 = vpack.c.b16 %v587, %v584
        %v675 = vpack.c.b16 %v588, %v585
        %v676 = vpack.c.b16 %v592, %v589
        %v677 = vpack.c.b16 %v593, %v590
        %v678 = vpack.c.b16 %v594, %v591
        %v679 = vpack.c.b16 %v598, %v595
        %v680 = vpack.c.b16 %v599, %v596
        %v681 = vpack.c.b16 %v600, %v597
        %v682 = vpack.c.b16 %v604, %v601
        %v683 = vpack.c.b16 %v605, %v602
        %v684 = vpack.c.b16 %v606, %v603
        %v685 = vpack.c.b16 %v610, %v607
        %v686 = vpack.c.b16 %v611, %v608
        %v687 = vpack.c.b16 %v612, %v609
        %v688 = vpack.c.b16 %v616, %v613
        %v689 = vpack.c.b16 %v617, %v614
        %v690 = vpack.c.b16 %v618, %v615
        %763 = vmatprep.subr.bf16.mxu0 %v620
        %764 = vmatpush1.bf16.msra.mxu0 %v619
        %765 = vmatprep.subr.bf16.mxu0 %v623
        %766 = vmatpush1.bf16.msra.mxu0 %v622
        %767 = vmatprep.subr.bf16.mxu0 %v626
        %768 = vmatpush1.bf16.msra.mxu0 %v625
        %769 = vmatprep.subr.bf16.mxu0 %v629
        %770 = vmatpush1.bf16.msra.mxu0 %v628
        %771 = vmatprep.subr.bf16.mxu0 %v632
        %772 = vmatpush1.bf16.msra.mxu0 %v631
        %773 = vmatprep.subr.bf16.mxu0 %v635
        %774 = vmatpush1.bf16.msra.mxu0 %v634
        %775 = vmatprep.subr.bf16.mxu0 %v638
        %776 = vmatpush1.bf16.msra.mxu0 %v637
        %777 = vmatprep.subr.bf16.mxu0 %v641
        %778 = vmatpush1.bf16.msra.mxu0 %v640
        %779 = vmatprep.subr.bf16.mxu0 %v644
        %780 = vmatpush1.bf16.msra.mxu0 %v643
        %781 = vmatprep.subr.bf16.mxu0 %v647
        %782 = vmatpush1.bf16.msra.mxu0 %v646
        %783 = vmatprep.subr.bf16.mxu0 %v650
        %784 = vmatpush1.bf16.msra.mxu0 %v649
        %785 = vmatprep.subr.bf16.mxu0 %v653
        %786 = vmatpush1.bf16.msra.mxu0 %v652
        %787 = vmatprep.subr.bf16.mxu0 %v656
        %788 = vmatpush1.bf16.msra.mxu0 %v655
        %789 = vmatprep.subr.bf16.mxu0 %v659
        %790 = vmatpush1.bf16.msra.mxu0 %v658
        %791 = vmatprep.subr.bf16.mxu0 %v662
        %792 = vmatpush1.bf16.msra.mxu0 %v661
        %793 = vmatprep.subr.bf16.mxu0 %v665
        %794 = vmatpush1.bf16.msra.mxu0 %v664
        %795 = vmatprep.mubr.bf16.mxu0 %v374
        %796 = vmatmul.mubr.bf16.gmra.mrb[0].mxu0 %v373
        %v797 = vpop.f32.mrb[0].mxu0
        %v798 = vadd.f32 0.0, %v797
        %v799 = vpop.f32.mrb[0].mxu0
        %v800 = vadd.f32 0.0, %v799
        %v801 = vpop.f32.mrb[0].mxu0
        %v802 = vadd.f32 0.0, %v801
        %v803 = vpop.f32.mrb[0].mxu0
        %v804 = vadd.f32 0.0, %v803
        %805 = vmatprep.mubr.bf16.mxu0 %v377
        %806 = vmatmul.mubr.bf16.gmra.mrb[0].mxu0 %v376
        %v807 = vpop.f32.mrb[0].mxu0
        %v808 = vadd.f32 0.0, %v807
        %v809 = vpop.f32.mrb[0].mxu0
        %v810 = vadd.f32 0.0, %v809
        %v811 = vpop.f32.mrb[0].mxu0
        %v812 = vadd.f32 0.0, %v811
        %v813 = vpop.f32.mrb[0].mxu0
        %v814 = vadd.f32 0.0, %v813
        %815 = vdwg.mxu0
        %816 = vmatprep.subr.bf16.mxu0 %v668
        %817 = vmatpush1.bf16.msra.mxu0 %v667
        %818 = vmatprep.subr.bf16.mxu0 %v671
        %819 = vmatpush1.bf16.msra.mxu0 %v670
        %820 = vmatprep.subr.bf16.mxu0 %v674
        %821 = vmatpush1.bf16.msra.mxu0 %v673
        %822 = vmatprep.subr.bf16.mxu0 %v677
        %823 = vmatpush1.bf16.msra.mxu0 %v676
        %824 = vmatprep.subr.bf16.mxu0 %v680
        %825 = vmatpush1.bf16.msra.mxu0 %v679
        %826 = vmatprep.subr.bf16.mxu0 %v683
        %827 = vmatpush1.bf16.msra.mxu0 %v682
        %828 = vmatprep.subr.bf16.mxu0 %v686
        %829 = vmatpush1.bf16.msra.mxu0 %v685
        %830 = vmatprep.subr.bf16.mxu0 %v689
        %831 = vmatpush1.bf16.msra.mxu0 %v688
        %832 = vmatprep.subr.bf16.mxu0 0
        %833 = vmatpush1.bf16.msra.mxu0 0
        %834 = vmatprep.subr.bf16.mxu0 0
        %835 = vmatpush1.bf16.msra.mxu0 0
        %836 = vmatprep.subr.bf16.mxu0 0
        %837 = vmatpush1.bf16.msra.mxu0 0
        %838 = vmatprep.subr.bf16.mxu0 0
        %839 = vmatpush1.bf16.msra.mxu0 0
        %840 = vmatprep.subr.bf16.mxu0 0
        %841 = vmatpush1.bf16.msra.mxu0 0
        %842 = vmatprep.subr.bf16.mxu0 0
        %843 = vmatpush1.bf16.msra.mxu0 0
        %844 = vmatprep.subr.bf16.mxu0 0
        %845 = vmatpush1.bf16.msra.mxu0 0
        %846 = vmatprep.subr.bf16.mxu0 0
        %847 = vmatpush1.bf16.msra.mxu0 0
        %848 = vmatprep.mubr.bf16.mxu0 0
        %849 = vmatmul.mubr.bf16.gmra.mrb[0].mxu0 %v375
        %v850 = vpop.f32.mrb[0].mxu0
        %v851 = vadd.f32 %v798, %v850
        %v852 = vpop.f32.mrb[0].mxu0
        %v853 = vadd.f32 %v800, %v852
        %v854 = vpop.f32.mrb[0].mxu0
        %v855 = vadd.f32 %v802, %v854
        %v856 = vpop.f32.mrb[0].mxu0
        %v857 = vadd.f32 %v804, %v856
        %858 = vmatprep.mubr.bf16.mxu0 0
        %859 = vmatmul.mubr.bf16.gmra.mrb[0].mxu0 %v378
        %v860 = vpop.f32.mrb[0].mxu0
        %v861 = vadd.f32 %v808, %v860
        %v862 = vpop.f32.mrb[0].mxu0
        %v863 = vadd.f32 %v810, %v862
        %v864 = vpop.f32.mrb[0].mxu0
        %v865 = vadd.f32 %v812, %v864
        %v866 = vpop.f32.mrb[0].mxu0
        %v867 = vadd.f32 %v814, %v866
        %868 = vdwg.mxu0
        %869 = vmatprep.subr.bf16.mxu0 0
        %870 = vmatpush1.bf16.msra.mxu0 %v621
        %871 = vmatprep.subr.bf16.mxu0 0
        %872 = vmatpush1.bf16.msra.mxu0 %v624
        %873 = vmatprep.subr.bf16.mxu0 0
        %874 = vmatpush1.bf16.msra.mxu0 %v627
        %875 = vmatprep.subr.bf16.mxu0 0
        %876 = vmatpush1.bf16.msra.mxu0 %v630
        %877 = vmatprep.subr.bf16.mxu0 0
        %878 = vmatpush1.bf16.msra.mxu0 %v633
        %879 = vmatprep.subr.bf16.mxu0 0
        %880 = vmatpush1.bf16.msra.mxu0 %v636
        %881 = vmatprep.subr.bf16.mxu0 0
        %882 = vmatpush1.bf16.msra.mxu0 %v639
        %883 = vmatprep.subr.bf16.mxu0 0
        %884 = vmatpush1.bf16.msra.mxu0 %v642
        %885 = vmatprep.subr.bf16.mxu0 0
        %886 = vmatpush1.bf16.msra.mxu0 %v645
        %887 = vmatprep.subr.bf16.mxu0 0
        %888 = vmatpush1.bf16.msra.mxu0 %v648
        %889 = vmatprep.subr.bf16.mxu0 0
        %890 = vmatpush1.bf16.msra.mxu0 %v651
        %891 = vmatprep.subr.bf16.mxu0 0
        %892 = vmatpush1.bf16.msra.mxu0 %v654
        %893 = vmatprep.subr.bf16.mxu0 0
        %894 = vmatpush1.bf16.msra.mxu0 %v657
        %895 = vmatprep.subr.bf16.mxu0 0
        %896 = vmatpush1.bf16.msra.mxu0 %v660
        %897 = vmatprep.subr.bf16.mxu0 0
        %898 = vmatpush1.bf16.msra.mxu0 %v663
        %899 = vmatprep.subr.bf16.mxu0 0
        %900 = vmatpush1.bf16.msra.mxu0 %v666
        %901 = vmatprep.mubr.bf16.mxu0 %v374
        %902 = vmatmul.mubr.bf16.gmra.mrb[0].mxu0 %v373
        %v903 = vpop.f32.mrb[0].mxu0
        %v904 = vadd.f32 0.0, %v903
        %v905 = vpop.f32.mrb[0].mxu0
        %v906 = vpop.f32.mrb[0].mxu0
        %v907 = vadd.f32 0.0, %v906
        %v908 = vpop.f32.mrb[0].mxu0
        %909 = vmatprep.mubr.bf16.mxu0 %v377
        %910 = vmatmul.mubr.bf16.gmra.mrb[0].mxu0 %v376
        %v911 = vpop.f32.mrb[0].mxu0
        %v912 = vadd.f32 0.0, %v911
        %v913 = vpop.f32.mrb[0].mxu0
        %v914 = vpop.f32.mrb[0].mxu0
        %v915 = vadd.f32 0.0, %v914
        %v916 = vpop.f32.mrb[0].mxu0
        %917 = vdwg.mxu0
        %918 = vmatprep.subr.bf16.mxu0 0
        %919 = vmatpush1.bf16.msra.mxu0 %v669
        %920 = vmatprep.subr.bf16.mxu0 0
        %921 = vmatpush1.bf16.msra.mxu0 %v672
        %922 = vmatprep.subr.bf16.mxu0 0
        %923 = vmatpush1.bf16.msra.mxu0 %v675
        %924 = vmatprep.subr.bf16.mxu0 0
        %925 = vmatpush1.bf16.msra.mxu0 %v678
        %926 = vmatprep.subr.bf16.mxu0 0
        %927 = vmatpush1.bf16.msra.mxu0 %v681
        %928 = vmatprep.subr.bf16.mxu0 0
        %929 = vmatpush1.bf16.msra.mxu0 %v684
        %930 = vmatprep.subr.bf16.mxu0 0
        %931 = vmatpush1.bf16.msra.mxu0 %v687
        %932 = vmatprep.subr.bf16.mxu0 0
        %933 = vmatpush1.bf16.msra.mxu0 %v690
        %934 = vmatprep.subr.bf16.mxu0 0
        %935 = vmatpush1.bf16.msra.mxu0 0
        %936 = vmatprep.subr.bf16.mxu0 0
        %937 = vmatpush1.bf16.msra.mxu0 0
        %938 = vmatprep.subr.bf16.mxu0 0
        %939 = vmatpush1.bf16.msra.mxu0 0
        %940 = vmatprep.subr.bf16.mxu0 0
        %941 = vmatpush1.bf16.msra.mxu0 0
        %942 = vmatprep.subr.bf16.mxu0 0
        %943 = vmatpush1.bf16.msra.mxu0 0
        %944 = vmatprep.subr.bf16.mxu0 0
        %945 = vmatpush1.bf16.msra.mxu0 0
        %946 = vmatprep.subr.bf16.mxu0 0
        %947 = vmatpush1.bf16.msra.mxu0 0
        %948 = vmatprep.subr.bf16.mxu0 0
        %949 = vmatpush1.bf16.msra.mxu0 0
        %950 = vmatprep.mubr.bf16.mxu0 0
        %951 = vmatmul.mubr.bf16.gmra.mrb[0].mxu0 %v375
        %v952 = vpop.f32.mrb[0].mxu0
        %v953 = vadd.f32 %v904, %v952
        %v954 = vpop.f32.mrb[0].mxu0
        %v955 = vpop.f32.mrb[0].mxu0
        %v956 = vadd.f32 %v907, %v955
        %v957 = vpop.f32.mrb[0].mxu0
        %958 = vmatprep.mubr.bf16.mxu0 0
        %959 = vmatmul.mubr.bf16.gmra.mrb[0].mxu0 %v378
        %v960 = vpop.f32.mrb[0].mxu0
        %v961 = vadd.f32 %v912, %v960
        %v962 = vpop.f32.mrb[0].mxu0
        %v963 = vpop.f32.mrb[0].mxu0
        %v964 = vadd.f32 %v915, %v963
        %v965 = vpop.f32.mrb[0].mxu0
        %966 = vdwg.mxu0
        %s967 = sld [smem:[#allocation2]]
        %v968 = vstv %s967
        %v969 = vmul.f32 %v851, %v968
        %v970 = vmul.f32 %v855, %v968
        %v971 = vmul.f32 %v861, %v968
        %v972 = vmul.f32 %v865, %v968
        %s973 = sld [smem:[#allocation7]]
        %v974 = vstv %s973
        %v975 = vadd.f32 %v969, %v974
        %v976 = vadd.f32 %v970, %v974
        %v977 = vadd.f32 %v971, %v974
        %v978 = vadd.f32 %v972, %v974
        %979 = vst [vmem:[%s271] sm:$0xff] %v975
        %980 = vst [vmem:[%s271 + $0x8] sm:$0xff] %v976
        %981 = vst [vmem:[%s271 + $0x10] sm:$0xff] %v977
        %982 = vst [vmem:[%s271 + $0x18] sm:$0xff] %v978
        %s983 = sld [smem:[#allocation2 + $0x1]]
        %v984 = vstv %s983
        %v985 = vmul.f32 %v853, %v984
        %v986 = vmul.f32 %v857, %v984
        %v987 = vmul.f32 %v863, %v984
        %v988 = vmul.f32 %v867, %v984
        %s989 = sld [smem:[#allocation7 + $0x1]]
        %v990 = vstv %s989
        %v991 = vadd.f32 %v985, %v990
        %v992 = vadd.f32 %v986, %v990
        %v993 = vadd.f32 %v987, %v990
        %v994 = vadd.f32 %v988, %v990
        %s995 = scalar_lea.vmem %s271, 32 [#allocation11]
        %996 = vst [vmem:[%s995] sm:$0xff] %v991
        %997 = vst [vmem:[%s995 + $0x8] sm:$0xff] %v992
        %998 = vst [vmem:[%s995 + $0x10] sm:$0xff] %v993
        %999 = vst [vmem:[%s995 + $0x18] sm:$0xff] %v994
        %s1000 = sld [smem:[#allocation2 + $0x2]]
        %v1001 = vstv %s1000
        %v1002 = vmul.f32 %v953, %v1001
        %v1003 = vmul.f32 %v956, %v1001
        %v1004 = vmul.f32 %v961, %v1001
        %v1005 = vmul.f32 %v964, %v1001
        %s1006 = sld [smem:[#allocation7 + $0x2]]
        %v1007 = vstv %s1006
        %v1008 = vadd.f32 %v1002, %v1007
        %v1009 = vadd.f32 %v1003, %v1007
        %v1010 = vadd.f32 %v1004, %v1007
        %v1011 = vadd.f32 %v1005, %v1007
        %s1012 = scalar_lea.vmem %s271, 64 [#allocation11]
        %1013 = vst [vmem:[%s1012] sm:$0xff] %v1008
        %1014 = vst [vmem:[%s1012 + $0x8] sm:$0xff] %v1009
        %1015 = vst [vmem:[%s1012 + $0x10] sm:$0xff] %v1010
        %1016 = vst [vmem:[%s1012 + $0x18] sm:$0xff] %v1011
        %s1017 = sand.u32 %s137, 1
        %s1018 = scalar_lea.sflag [#allocation4], %s1017
        %s1019 = sand.u32 %s137, 1
        %s1020 = smul.addr %s1019, 96
        %s1021 = scalar_lea.vmem [#allocation11], %s1020
        // Predicated region
        $region53: #{tpu_custom_call.1} parent=35 // pred_check
          %p1022 = pneg %p147
        $region54: #{tpu_custom_call.1} parent=35 // pred_check_branch
          %1024 = sbr.rel (%p1022) target = $region56
        $region55: #{tpu_custom_call.1} parent=35 // pred_region
          %s1025 = smul.u32 4, %s29
          %s1027 = ssub.s32 1536, 1536
          %1028 = vsyncadd %s1018, %s1027
          %s1029 = smul.addr %s28, 12
          %s1030 = sadd.s32 %s1025, %s1029
          %s1031 = smul.addr %s1030, 128
          %s1032 = scalar_lea.hbm %s4, %s1031
          %s1033 = sshll.u32 %s1021, 4
          %s1034 = int_to_ptr.vmem [resolvable:$true] %s1033
          %1039 = dma.vmem_to_hbm [thread:$0]  %s1034, 1536, %s1032, %s1018, 128, 128, 8
        $region56: #{tpu_custom_call.1} parent=35 // pred_fallthru
          _
      $region36: #{tpu_custom_call.1} parent=5 // pred_fallthru
        _
      %p1040 = scmp.le.s32.totalorder 2, %s19
      // Predicated region
      $region57: #{tpu_custom_call.1} parent=5 // pred_check
        %p1041 = pneg %p1040
      $region58: #{tpu_custom_call.1} parent=5 // pred_check_branch
        %1043 = sbr.rel (%p1041) target = $region60
      $region59: #{tpu_custom_call.1} parent=5 // pred_region
        %s1044 = ssub.s32 %s19, 2
        // Predicated region
        $region61: #{tpu_custom_call.1} parent=59 // pred_check
          %p1045 = pneg %p153
        $region62: #{tpu_custom_call.1} parent=59 // pred_check_branch
          %1047 = sbr.rel (%p1045) target = $region64
        $region63: #{tpu_custom_call.1} parent=59 // pred_region
          %s1048 = sand.u32 %s138, 1
          %s1049 = scalar_lea.sflag [#allocation4], %s1048
          %s1050 = sand.u32 %s138, 1
          %s1051 = smul.addr %s1050, 96
          %s1052 = scalar_lea.vmem [#allocation11], %s1051
          %1053 = dma.done %s1049, 1536
        $region64: #{tpu_custom_call.1} parent=59 // pred_fallthru
          _
      $region60: #{tpu_custom_call.1} parent=5 // pred_fallthru
        _
    $region6: #{tpu_custom_call.1} parent=1 // loop_footer
      %s23 = sadd.s32 1, %s19
    $region7: #{tpu_custom_call.1} parent=1 // loop_footer_branch
      %18 = sbr.rel target = $region3
    $region8: #{tpu_custom_call.1} parent=1 // loop_exit
      _
    %1054 = vsyncpa [#allocation3], 1
    %s1055 = scalar_lea.sflag [#allocation3], 1
    %1056 = vsyncpa %s1055, 1
    %1057 = vsyncpa [#allocation10], 1
    %1058 = vsyncpa [#allocation4], 1
    %s1059 = scalar_lea.sflag [#allocation4], 1
    %1060 = vsyncpa %s1059, 1
    %1061 = vsyncpa [#allocation5], 1
    %s1062 = scalar_lea.sflag [#allocation5], 1
    %1063 = vsyncpa %s1062, 1
    %1064 = vsyncpa [#allocation6], 1
    %s1065 = scalar_lea.sflag [#allocation6], 1
    %1066 = vsyncpa %s1065, 1

</llo_original>
